<compile_context>
chip_gen: v6e
topology: v6e:2x2x1
jax: 0.10.0
libtpu: 0.0.40
codegen_flags: <defaults>
</compile_context>

<pallas_src>
import functools

import jax
import jax.numpy as jnp
from jax.experimental import pallas as pl
from jax.experimental.pallas import tpu as pltpu

BN_EPS = 1e-5


def _round_up(n, m):
    return ((n + m - 1) // m) * m


def _mlp_fused_kernel(*refs, n_true, mask_rows):
    """refs = (x_ref, [w_ref, gamma_ref, beta_ref] * L, o_ref).

    Single grid point; every operand fully resident in VMEM.  Intermediate
    activations never round-trip to HBM.
    """
    num_layers = (len(refs) - 2) // 3
    x_ref = refs[0]
    o_ref = refs[-1]

    h = x_ref[...]                      # bf16 (n_pad, d_in_p)
    n_pad = h.shape[0]
    inv_n = jnp.float32(1.0 / n_true)   # divide by TRUE batch, not padded batch

    if mask_rows:
        row_mask = jax.lax.broadcasted_iota(jnp.int32, (n_pad, 1), 0) < n_true

    act = None
    for layer in range(num_layers):
        w_ref, g_ref, b_ref = refs[1 + 3 * layer: 4 + 3 * layer]

        # bf16 x bf16 -> f32 accumulate on the MXU (no Linear bias: BN cancels it).
        y = jnp.dot(h, w_ref[...], preferred_element_type=jnp.float32)

        # BatchNorm1d (training mode).  Padded batch rows of y are exactly zero
        # (zero inputs, no bias), so plain sums over the padded batch equal sums
        # over the true batch; divide by n_true.
        mean = jnp.sum(y, axis=0, keepdims=True) * inv_n
        ex2 = jnp.sum(y * y, axis=0, keepdims=True) * inv_n
        var = jnp.maximum(ex2 - mean * mean, 0.0)          # guard cancellation

        scale = g_ref[...] * jax.lax.rsqrt(var + BN_EPS)   # EUP rsqrt
        shift = b_ref[...] - mean * scale                  # mean folded into shift
        act = jnp.maximum(y * scale + shift, 0.0)          # fused BN-apply + ReLU

        last = layer == num_layers - 1
        if mask_rows and not last:
            # Keep padded batch rows exactly zero so the next layer's BN stats
            # stay uncorrupted (padded rows would otherwise become max(shift,0)).
            act = jnp.where(row_mask, act, 0.0)
        if not last:
            h = act.astype(jnp.bfloat16)   # feed next matmul in bf16

    o_ref[...] = act.astype(o_ref.dtype)


def init_mlp_params(key, in_dim, dims=(800, 400, 200)):
    """Synthetic params matching nn.Linear / nn.BatchNorm1d shapes.

    The Linear bias is omitted: it is exactly cancelled by the BatchNorm mean
    subtraction, so it cannot affect the forward output.
    """
    params = []
    d_in = in_dim
    for d_out in dims:
        key, kw = jax.random.split(key)
        bound = 1.0 / (d_in ** 0.5)
        w = jax.random.uniform(kw, (d_in, d_out), jnp.float32, -bound, bound)
        gamma = jnp.ones((1, d_out), jnp.float32)   # BatchNorm1d.weight init
        beta = jnp.zeros((1, d_out), jnp.float32)   # BatchNorm1d.bias init
        params.append((w, gamma, beta))
        d_in = d_out
    return params


def prepare_mlp_params(params, in_dim):
    """One-time padding + bf16 cast of all parameters (hoisted off the call path).

    Feature axes are zero-padded to multiples of 128 (lane-dense, full MXU
    columns).  Padded weight rows/cols are zero and padded beta is zero, so
    padded feature columns contribute exactly nothing to real outputs.
    Returns (meta, padded_arrays) with meta a hashable tuple of static dims.
    """
    d_in_p = _round_up(in_dim, 128)
    padded = []
    prev_pad = d_in_p
    out_dim = in_dim
    for (w, gamma, beta) in params:
        di, do = w.shape
        do_p = _round_up(do, 128)
        w_p = jnp.zeros((prev_pad, do_p), jnp.bfloat16).at[:di, :do].set(
            w.astype(jnp.bfloat16))
        g_p = jnp.ones((1, do_p), jnp.float32).at[:, :do].set(gamma)
        b_p = jnp.zeros((1, do_p), jnp.float32).at[:, :do].set(beta)
        padded += [w_p, g_p, b_p]
        prev_pad, out_dim = do_p, do
    padded = tuple(jax.device_put(jnp.asarray(a)) for a in padded)
    meta = (in_dim, d_in_p, out_dim, prev_pad)
    return meta, padded


def _vmem_limit_bytes(n_pad, d_in_p, padded_params, out_dim_p, out_dtype):
    """Size the scoped-VMEM limit from the actual resident footprint + headroom."""
    total = n_pad * d_in_p * 2                                   # x (bf16)
    max_dp = d_in_p
    for i in range(0, len(padded_params), 3):
        w, g, b = padded_params[i:i + 3]
        total += w.size * 2 + g.size * 4 + b.size * 4            # params
        max_dp = max(max_dp, w.shape[1])
    total += n_pad * out_dim_p * jnp.dtype(out_dtype).itemsize   # output
    total += 6 * n_pad * max_dp * 4                              # live f32 activations
    return int(min(max(2 * total, 32 * 2 ** 20), 100 * 2 ** 20))


@functools.partial(jax.jit, static_argnames=("meta", "out_dtype"))
def mlp_forward(x, padded_params, *, meta, out_dtype=jnp.float32):
    d_in, d_in_p, out_dim, out_dim_p = meta
    n = x.shape[0]
    assert x.shape[1] == d_in, (x.shape, d_in)

    # Pad batch to a multiple of 16 (bf16 sublane packing for the MXU LHS);
    # padded rows are zero and are masked out of BN stats in the kernel.
    n_pad = max(_round_up(n, 16), 16)
    x_p = jnp.zeros((n_pad, d_in_p), jnp.bfloat16).at[:n, :d_in].set(
        x.astype(jnp.bfloat16))

    flat_inputs = (x_p,) + tuple(padded_params)
    kernel = functools.partial(_mlp_fused_kernel, n_true=n, mask_rows=(n_pad != n))

    out_p = pl.pallas_call(
        kernel,
        out_shape=jax.ShapeDtypeStruct((n_pad, out_dim_p), out_dtype),
        # Single grid point; block_shape == full array dims for every operand.
        in_specs=[pl.BlockSpec(a.shape, lambda: (0, 0)) for a in flat_inputs],
        out_specs=pl.BlockSpec((n_pad, out_dim_p), lambda: (0, 0)),
        compiler_params=pltpu.CompilerParams(
            vmem_limit_bytes=_vmem_limit_bytes(
                n_pad, d_in_p, padded_params, out_dim_p, out_dtype)),
    )(*flat_inputs)
    # Slice off batch/feature padding (output store itself is lane-dense).
    return out_p[:n, :out_dim]


def _mlp_reference(x, params):
    """Pure-JAX f32 reference (PyTorch training-mode Linear+BN+ReLU)."""
    h = x
    for (w, gamma, beta) in params:
        y = h @ w
        mean = jnp.mean(y, axis=0, keepdims=True)
        var = jnp.mean((y - mean) ** 2, axis=0, keepdims=True)
        h = jnp.maximum((y - mean) * jax.lax.rsqrt(var + BN_EPS) * gamma + beta, 0.0)
    return h


if __name__ == "__main__":
    key = jax.random.PRNGKey(0)
    k_x, k_p = jax.random.split(key)

    # Small shapes consistent with the module: batch=8, in_dim=32, dims=(64, 48, 32)
    batch, in_dim = 8, 32
    dims = (64, 48, 32)

    x = jax.random.normal(k_x, (batch, in_dim), jnp.float32)
    params = init_mlp_params(k_p, in_dim, dims)

    # Pad / cast parameters exactly once (off the per-call path).
    meta, padded_params = prepare_mlp_params(params, in_dim)

    out = mlp_forward(x, padded_params, meta=meta, out_dtype=jnp.float32)
    jax.block_until_ready(out)

    assert out.shape == (batch, dims[-1]), out.shape
    assert bool(jnp.all(out >= 0.0))  # ReLU output

    ref = _mlp_reference(x, params)
    max_err = float(jnp.max(jnp.abs(out - ref)))
    assert max_err < 0.1, f"mismatch vs reference: {max_err}"

    print("KERNEL_OK")
</pallas_src>

<mosaic_0001>
module attributes {stable_mosaic.version = 11 : i64} {
  func.func @_mlp_fused_kernel(%arg0: memref<16x128xbf16, #tpu.memory_space<vmem>>, %arg1: memref<128x128xbf16, #tpu.memory_space<vmem>>, %arg2: memref<1x128xf32, #tpu.memory_space<vmem>>, %arg3: memref<1x128xf32, #tpu.memory_space<vmem>>, %arg4: memref<128x128xbf16, #tpu.memory_space<vmem>>, %arg5: memref<1x128xf32, #tpu.memory_space<vmem>>, %arg6: memref<1x128xf32, #tpu.memory_space<vmem>>, %arg7: memref<128x128xbf16, #tpu.memory_space<vmem>>, %arg8: memref<1x128xf32, #tpu.memory_space<vmem>>, %arg9: memref<1x128xf32, #tpu.memory_space<vmem>>, %arg10: memref<16x128xf32, #tpu.memory_space<vmem>>) attributes {dimension_semantics = [], scalar_prefetch = 0 : i64, scratch_operands = 0 : i64, tpu.core_type = #tpu.core_type<tc>} {
    %c0 = arith.constant 0 : index
    %c0_0 = arith.constant 0 : index
    %0 = vector.load %arg0[%c0, %c0_0] : memref<16x128xbf16, #tpu.memory_space<vmem>>, vector<16x128xbf16>
    %1 = tpu.iota {dimensions = array<i32: 0>} : vector<16x1xi32>
    %c8_i32 = arith.constant 8 : i32
    %2 = vector.broadcast %c8_i32 : i32 to vector<16x1xi32>
    %3 = arith.cmpi slt, %1, %2 : vector<16x1xi32>
    %c0_1 = arith.constant 0 : index
    %c0_2 = arith.constant 0 : index
    %4 = vector.load %arg1[%c0_1, %c0_2] : memref<128x128xbf16, #tpu.memory_space<vmem>>, vector<128x128xbf16>
    %cst = arith.constant dense<0.000000e+00> : vector<16x128xf32>
    %5 = tpu.matmul %0, %4, %cst {dimension_numbers = #tpu.dot_dimension_numbers<[1], [0], [0], [1], [0, 0, 1, 1], [], []>} : vector<16x128xbf16>, vector<128x128xbf16>, vector<16x128xf32> -> vector<16x128xf32>
    %cst_3 = arith.constant dense<0.000000e+00> : vector<128xf32>
    %6 = vector.multi_reduction <add>, %5, %cst_3 [0] : vector<16x128xf32> to vector<128xf32>
    %7 = vector.shape_cast %6 : vector<128xf32> to vector<1x128xf32>
    %cst_4 = arith.constant 1.250000e-01 : f32
    %8 = vector.broadcast %cst_4 : f32 to vector<1x128xf32>
    %9 = arith.mulf %7, %8 : vector<1x128xf32>
    %10 = arith.mulf %5, %5 : vector<16x128xf32>
    %cst_5 = arith.constant dense<0.000000e+00> : vector<128xf32>
    %11 = vector.multi_reduction <add>, %10, %cst_5 [0] : vector<16x128xf32> to vector<128xf32>
    %12 = vector.shape_cast %11 : vector<128xf32> to vector<1x128xf32>
    %cst_6 = arith.constant 1.250000e-01 : f32
    %13 = vector.broadcast %cst_6 : f32 to vector<1x128xf32>
    %14 = arith.mulf %12, %13 : vector<1x128xf32>
    %15 = arith.mulf %9, %9 : vector<1x128xf32>
    %16 = arith.subf %14, %15 : vector<1x128xf32>
    %cst_7 = arith.constant 0.000000e+00 : f32
    %17 = vector.broadcast %cst_7 : f32 to vector<1x128xf32>
    %18 = arith.maximumf %16, %17 : vector<1x128xf32>
    %c0_8 = arith.constant 0 : index
    %c0_9 = arith.constant 0 : index
    %19 = vector.load %arg2[%c0_8, %c0_9] : memref<1x128xf32, #tpu.memory_space<vmem>>, vector<1x128xf32>
    %cst_10 = arith.constant 9.99999974E-6 : f32
    %20 = vector.broadcast %cst_10 : f32 to vector<1x128xf32>
    %21 = arith.addf %18, %20 : vector<1x128xf32>
    %22 = math.rsqrt %21 : vector<1x128xf32>
    %23 = arith.mulf %19, %22 : vector<1x128xf32>
    %c0_11 = arith.constant 0 : index
    %c0_12 = arith.constant 0 : index
    %24 = vector.load %arg3[%c0_11, %c0_12] : memref<1x128xf32, #tpu.memory_space<vmem>>, vector<1x128xf32>
    %25 = arith.mulf %9, %23 : vector<1x128xf32>
    %26 = arith.subf %24, %25 : vector<1x128xf32>
    %27 = vector.broadcast %23 : vector<1x128xf32> to vector<16x128xf32>
    %28 = arith.mulf %5, %27 : vector<16x128xf32>
    %29 = vector.broadcast %26 : vector<1x128xf32> to vector<16x128xf32>
    %30 = arith.addf %28, %29 : vector<16x128xf32>
    %cst_13 = arith.constant 0.000000e+00 : f32
    %31 = vector.broadcast %cst_13 : f32 to vector<16x128xf32>
    %32 = arith.maximumf %30, %31 : vector<16x128xf32>
    %cst_14 = arith.constant 0.000000e+00 : f32
    %33 = vector.shape_cast %3 : vector<16x1xi1> to vector<16x1xi1>
    %34 = vector.broadcast %33 : vector<16x1xi1> to vector<16x128xi1>
    %35 = vector.broadcast %cst_14 : f32 to vector<16x128xf32>
    %36 = arith.select %34, %32, %35 : vector<16x128xi1>, vector<16x128xf32>
    %37 = arith.truncf %36 : vector<16x128xf32> to vector<16x128xbf16>
    %c0_15 = arith.constant 0 : index
    %c0_16 = arith.constant 0 : index
    %38 = vector.load %arg4[%c0_15, %c0_16] : memref<128x128xbf16, #tpu.memory_space<vmem>>, vector<128x128xbf16>
    %cst_17 = arith.constant dense<0.000000e+00> : vector<16x128xf32>
    %39 = tpu.matmul %37, %38, %cst_17 {dimension_numbers = #tpu.dot_dimension_numbers<[1], [0], [0], [1], [0, 0, 1, 1], [], []>} : vector<16x128xbf16>, vector<128x128xbf16>, vector<16x128xf32> -> vector<16x128xf32>
    %cst_18 = arith.constant dense<0.000000e+00> : vector<128xf32>
    %40 = vector.multi_reduction <add>, %39, %cst_18 [0] : vector<16x128xf32> to vector<128xf32>
    %41 = vector.shape_cast %40 : vector<128xf32> to vector<1x128xf32>
    %cst_19 = arith.constant 1.250000e-01 : f32
    %42 = vector.broadcast %cst_19 : f32 to vector<1x128xf32>
    %43 = arith.mulf %41, %42 : vector<1x128xf32>
    %44 = arith.mulf %39, %39 : vector<16x128xf32>
    %cst_20 = arith.constant dense<0.000000e+00> : vector<128xf32>
    %45 = vector.multi_reduction <add>, %44, %cst_20 [0] : vector<16x128xf32> to vector<128xf32>
    %46 = vector.shape_cast %45 : vector<128xf32> to vector<1x128xf32>
    %cst_21 = arith.constant 1.250000e-01 : f32
    %47 = vector.broadcast %cst_21 : f32 to vector<1x128xf32>
    %48 = arith.mulf %46, %47 : vector<1x128xf32>
    %49 = arith.mulf %43, %43 : vector<1x128xf32>
    %50 = arith.subf %48, %49 : vector<1x128xf32>
    %cst_22 = arith.constant 0.000000e+00 : f32
    %51 = vector.broadcast %cst_22 : f32 to vector<1x128xf32>
    %52 = arith.maximumf %50, %51 : vector<1x128xf32>
    %c0_23 = arith.constant 0 : index
    %c0_24 = arith.constant 0 : index
    %53 = vector.load %arg5[%c0_23, %c0_24] : memref<1x128xf32, #tpu.memory_space<vmem>>, vector<1x128xf32>
    %cst_25 = arith.constant 9.99999974E-6 : f32
    %54 = vector.broadcast %cst_25 : f32 to vector<1x128xf32>
    %55 = arith.addf %52, %54 : vector<1x128xf32>
    %56 = math.rsqrt %55 : vector<1x128xf32>
    %57 = arith.mulf %53, %56 : vector<1x128xf32>
    %c0_26 = arith.constant 0 : index
    %c0_27 = arith.constant 0 : index
    %58 = vector.load %arg6[%c0_26, %c0_27] : memref<1x128xf32, #tpu.memory_space<vmem>>, vector<1x128xf32>
    %59 = arith.mulf %43, %57 : vector<1x128xf32>
    %60 = arith.subf %58, %59 : vector<1x128xf32>
    %61 = vector.broadcast %57 : vector<1x128xf32> to vector<16x128xf32>
    %62 = arith.mulf %39, %61 : vector<16x128xf32>
    %63 = vector.broadcast %60 : vector<1x128xf32> to vector<16x128xf32>
    %64 = arith.addf %62, %63 : vector<16x128xf32>
    %cst_28 = arith.constant 0.000000e+00 : f32
    %65 = vector.broadcast %cst_28 : f32 to vector<16x128xf32>
    %66 = arith.maximumf %64, %65 : vector<16x128xf32>
    %cst_29 = arith.constant 0.000000e+00 : f32
    %67 = vector.shape_cast %3 : vector<16x1xi1> to vector<16x1xi1>
    %68 = vector.broadcast %67 : vector<16x1xi1> to vector<16x128xi1>
    %69 = vector.broadcast %cst_29 : f32 to vector<16x128xf32>
    %70 = arith.select %68, %66, %69 : vector<16x128xi1>, vector<16x128xf32>
    %71 = arith.truncf %70 : vector<16x128xf32> to vector<16x128xbf16>
    %c0_30 = arith.constant 0 : index
    %c0_31 = arith.constant 0 : index
    %72 = vector.load %arg7[%c0_30, %c0_31] : memref<128x128xbf16, #tpu.memory_space<vmem>>, vector<128x128xbf16>
    %cst_32 = arith.constant dense<0.000000e+00> : vector<16x128xf32>
    %73 = tpu.matmul %71, %72, %cst_32 {dimension_numbers = #tpu.dot_dimension_numbers<[1], [0], [0], [1], [0, 0, 1, 1], [], []>} : vector<16x128xbf16>, vector<128x128xbf16>, vector<16x128xf32> -> vector<16x128xf32>
    %cst_33 = arith.constant dense<0.000000e+00> : vector<128xf32>
    %74 = vector.multi_reduction <add>, %73, %cst_33 [0] : vector<16x128xf32> to vector<128xf32>
    %75 = vector.shape_cast %74 : vector<128xf32> to vector<1x128xf32>
    %cst_34 = arith.constant 1.250000e-01 : f32
    %76 = vector.broadcast %cst_34 : f32 to vector<1x128xf32>
    %77 = arith.mulf %75, %76 : vector<1x128xf32>
    %78 = arith.mulf %73, %73 : vector<16x128xf32>
    %cst_35 = arith.constant dense<0.000000e+00> : vector<128xf32>
    %79 = vector.multi_reduction <add>, %78, %cst_35 [0] : vector<16x128xf32> to vector<128xf32>
    %80 = vector.shape_cast %79 : vector<128xf32> to vector<1x128xf32>
    %cst_36 = arith.constant 1.250000e-01 : f32
    %81 = vector.broadcast %cst_36 : f32 to vector<1x128xf32>
    %82 = arith.mulf %80, %81 : vector<1x128xf32>
    %83 = arith.mulf %77, %77 : vector<1x128xf32>
    %84 = arith.subf %82, %83 : vector<1x128xf32>
    %cst_37 = arith.constant 0.000000e+00 : f32
    %85 = vector.broadcast %cst_37 : f32 to vector<1x128xf32>
    %86 = arith.maximumf %84, %85 : vector<1x128xf32>
    %c0_38 = arith.constant 0 : index
    %c0_39 = arith.constant 0 : index
    %87 = vector.load %arg8[%c0_38, %c0_39] : memref<1x128xf32, #tpu.memory_space<vmem>>, vector<1x128xf32>
    %cst_40 = arith.constant 9.99999974E-6 : f32
    %88 = vector.broadcast %cst_40 : f32 to vector<1x128xf32>
    %89 = arith.addf %86, %88 : vector<1x128xf32>
    %90 = math.rsqrt %89 : vector<1x128xf32>
    %91 = arith.mulf %87, %90 : vector<1x128xf32>
    %c0_41 = arith.constant 0 : index
    %c0_42 = arith.constant 0 : index
    %92 = vector.load %arg9[%c0_41, %c0_42] : memref<1x128xf32, #tpu.memory_space<vmem>>, vector<1x128xf32>
    %93 = arith.mulf %77, %91 : vector<1x128xf32>
    %94 = arith.subf %92, %93 : vector<1x128xf32>
    %95 = vector.broadcast %91 : vector<1x128xf32> to vector<16x128xf32>
    %96 = arith.mulf %73, %95 : vector<16x128xf32>
    %97 = vector.broadcast %94 : vector<1x128xf32> to vector<16x128xf32>
    %98 = arith.addf %96, %97 : vector<16x128xf32>
    %cst_43 = arith.constant 0.000000e+00 : f32
    %99 = vector.broadcast %cst_43 : f32 to vector<16x128xf32>
    %100 = arith.maximumf %98, %99 : vector<16x128xf32>
    %c0_44 = arith.constant 0 : index
    %c0_45 = arith.constant 0 : index
    %101 = vector.load %arg10[%c0_44, %c0_45] : memref<16x128xf32, #tpu.memory_space<vmem>>, vector<16x128xf32>
    tpu.vector_store %arg10[%c0_44, %c0_45], %100 {strides = array<i32>} : memref<16x128xf32, #tpu.memory_space<vmem>>, vector<16x128xf32>,
    return
  }
}

</mosaic_0001>

<llo_original>
// kernel: mlp_forward.1
$region0: #{mlp_forward.1}
  #allocation0 [shape = 'u32[]', space=smem, size = 0x4, offset = 0x4, fixed_abs, tag = 'smem constant byte address 0x4 - core index']
  #allocation1 [shape = 'u32[144,128]{1,0:T(1,128)}', space=vmem, size = 0x12000, scoped, tag = 'internal scratch']
  %s0 = inlined_call_operand.vmem [shape: bf16[16,128], index: 0, kind: input, shape index: {}]
  %s1 = inlined_call_operand.hbm [shape: bf16[128,128], index: 1, kind: input, shape index: {}]
  %s2 = inlined_call_operand.vmem [shape: f32[1,128], index: 2, kind: input, shape index: {}]
  %s3 = inlined_call_operand.vmem [shape: f32[1,128], index: 3, kind: input, shape index: {}]
  %s4 = inlined_call_operand.hbm [shape: bf16[128,128], index: 4, kind: input, shape index: {}]
  %s5 = inlined_call_operand.vmem [shape: f32[1,128], index: 5, kind: input, shape index: {}]
  %s6 = inlined_call_operand.vmem [shape: f32[1,128], index: 6, kind: input, shape index: {}]
  %s7 = inlined_call_operand.hbm [shape: bf16[128,128], index: 7, kind: input, shape index: {}]
  %s8 = inlined_call_operand.vmem [shape: f32[1,128], index: 8, kind: input, shape index: {}]
  %s9 = inlined_call_operand.vmem [shape: f32[1,128], index: 9, kind: input, shape index: {}]
  %s10 = inlined_call_operand.vmem [shape: f32[16,128], index: 10, kind: output, shape index: {}]
  %s11 = sld [smem:[#allocation0]]
  $region62: #{mlp_forward.1} parent=0
    _
  %s13 = ssub.s32 1, %s11
  %s14 = scalar_select 0, %s13, %s11
  $region1: #{mlp_forward.1} parent=0
    #allocation2 [shape = 'u8[32768]{0}', space=vmem, size = 0x8000, scoped, tag = 'input window, operand 1, single buffered']
    #allocation3 [shape = 's32[1]{0}', space=sflag, size = 0x4, scoped, tag = 'scoped memory for mlp_forward.1']
    #allocation4 [shape = 'u8[32768]{0}', space=vmem, size = 0x8000, scoped, tag = 'input window, operand 4, single buffered']
    #allocation5 [shape = 's32[1]{0}', space=sflag, size = 0x4, scoped, tag = 'scoped memory for mlp_forward.1']
    #allocation6 [shape = 'u8[32768]{0}', space=vmem, size = 0x8000, scoped, tag = 'input window, operand 7, single buffered']
    %15 = vsyncpa [#allocation3], 0
    %16 = vsyncpa [#allocation5], 0
    // Predicated region
    $region2: #{mlp_forward.1} parent=1 // pred_check
      _
    $region3: #{mlp_forward.1} parent=1 // pred_check_branch
      %18 = sbr.rel (0) target = $region5
    $region4: #{mlp_forward.1} parent=1 // pred_region
      _
    $region5: #{mlp_forward.1} parent=1 // pred_fallthru
      _
    // Predicated region
    $region6: #{mlp_forward.1} parent=1 // pred_check
      _
    $region7: #{mlp_forward.1} parent=1 // pred_check_branch
      %20 = sbr.rel (0) target = $region9
    $region8: #{mlp_forward.1} parent=1 // pred_region
      %s22 = ssub.s32 1024, 1024
      %23 = vsyncadd [#allocation3], %s22
      %s24 = sshll.u32 [#allocation2], 4
      %s25 = int_to_ptr.vmem [resolvable:$true] %s24
      %30 = dma.hbm_to_vmem [thread:$0]  %s1, 1024, %s25, [#allocation3], 64, 64, 4
    $region9: #{mlp_forward.1} parent=1 // pred_fallthru
      _
    // Predicated region
    $region10: #{mlp_forward.1} parent=1 // pred_check
      _
    $region11: #{mlp_forward.1} parent=1 // pred_check_branch
      %32 = sbr.rel (0) target = $region13
    $region12: #{mlp_forward.1} parent=1 // pred_region
      _
    $region13: #{mlp_forward.1} parent=1 // pred_fallthru
      _
    // Predicated region
    $region14: #{mlp_forward.1} parent=1 // pred_check
      _
    $region15: #{mlp_forward.1} parent=1 // pred_check_branch
      %34 = sbr.rel (0) target = $region17
    $region16: #{mlp_forward.1} parent=1 // pred_region
      _
    $region17: #{mlp_forward.1} parent=1 // pred_fallthru
      _
    // Predicated region
    $region18: #{mlp_forward.1} parent=1 // pred_check
      _
    $region19: #{mlp_forward.1} parent=1 // pred_check_branch
      %36 = sbr.rel (0) target = $region21
    $region20: #{mlp_forward.1} parent=1 // pred_region
      %s38 = ssub.s32 1024, 1024
      %39 = vsyncadd [#allocation5], %s38
      %s40 = sshll.u32 [#allocation4], 4
      %s41 = int_to_ptr.vmem [resolvable:$true] %s40
      %46 = dma.hbm_to_vmem [thread:$0]  %s4, 1024, %s41, [#allocation5], 64, 64, 4
    $region21: #{mlp_forward.1} parent=1 // pred_fallthru
      _
    // Predicated region
    $region22: #{mlp_forward.1} parent=1 // pred_check
      _
    $region23: #{mlp_forward.1} parent=1 // pred_check_branch
      %48 = sbr.rel (0) target = $region25
    $region24: #{mlp_forward.1} parent=1 // pred_region
      _
    $region25: #{mlp_forward.1} parent=1 // pred_fallthru
      _
    // Predicated region
    $region26: #{mlp_forward.1} parent=1 // pred_check
      _
    $region27: #{mlp_forward.1} parent=1 // pred_check_branch
      %50 = sbr.rel (0) target = $region29
    $region28: #{mlp_forward.1} parent=1 // pred_region
      _
    $region29: #{mlp_forward.1} parent=1 // pred_fallthru
      _
    // Predicated region
    $region30: #{mlp_forward.1} parent=1 // pred_check
      _
    $region31: #{mlp_forward.1} parent=1 // pred_check_branch
      %52 = sbr.rel (0) target = $region33
    $region32: #{mlp_forward.1} parent=1 // pred_region
      %s54 = ssub.s32 1024, 1024
      %55 = vsyncadd [#allocation5], %s54
      %s56 = sshll.u32 [#allocation6], 4
      %s57 = int_to_ptr.vmem [resolvable:$true] %s56
      %62 = dma.hbm_to_vmem [thread:$0]  %s7, 1024, %s57, [#allocation5], 64, 64, 4
    $region33: #{mlp_forward.1} parent=1 // pred_fallthru
      _
    // Predicated region
    $region34: #{mlp_forward.1} parent=1 // pred_check
      _
    $region35: #{mlp_forward.1} parent=1 // pred_check_branch
      %64 = sbr.rel (0) target = $region37
    $region36: #{mlp_forward.1} parent=1 // pred_region
      _
    $region37: #{mlp_forward.1} parent=1 // pred_fallthru
      _
    // Predicated region
    $region38: #{mlp_forward.1} parent=1 // pred_check
      _
    $region39: #{mlp_forward.1} parent=1 // pred_check_branch
      %66 = sbr.rel (0) target = $region41
    $region40: #{mlp_forward.1} parent=1 // pred_region
      _
    $region41: #{mlp_forward.1} parent=1 // pred_fallthru
      _
    // Predicated region
    $region42: #{mlp_forward.1} parent=1 // pred_check
      _
    $region43: #{mlp_forward.1} parent=1 // pred_check_branch
      %68 = sbr.rel (0) target = $region45
    $region44: #{mlp_forward.1} parent=1 // pred_region
      %69 = dma.done [#allocation3], 1024
    $region45: #{mlp_forward.1} parent=1 // pred_fallthru
      _
    // Predicated region
    $region46: #{mlp_forward.1} parent=1 // pred_check
      _
    $region47: #{mlp_forward.1} parent=1 // pred_check_branch
      %71 = sbr.rel (0) target = $region49
    $region48: #{mlp_forward.1} parent=1 // pred_region
      %72 = dma.done [#allocation5], 1024
    $region49: #{mlp_forward.1} parent=1 // pred_fallthru
      _
    // Predicated region
    $region50: #{mlp_forward.1} parent=1 // pred_check
      _
    $region51: #{mlp_forward.1} parent=1 // pred_check_branch
      %74 = sbr.rel (0) target = $region53
    $region52: #{mlp_forward.1} parent=1 // pred_region
      %75 = dma.done [#allocation5], 1024
    $region53: #{mlp_forward.1} parent=1 // pred_fallthru
      _
    %v77 = vld [vmem:[%s0] sm:$0xf]
    %v78 = vld [vmem:[%s0 + $0x4] sm:$0xf]
    %v79 = vlaneseq
    %v80 = vshrl.u32 %v79, 7
    %v81 = vadd.s32 %v80, 8
    %vm82 = vcmp.lt.s32.totalorder %v80, 8
    %vm83 = vcmp.lt.s32.totalorder %v81, 8
    %v84 = vld [vmem:[#allocation2] sm:$0xf]
    %v85 = vld [vmem:[#allocation2 + $0x4] sm:$0xf]
    %v86 = vld [vmem:[#allocation2 + $0x8] sm:$0xf]
    %v87 = vld [vmem:[#allocation2 + $0xc] sm:$0xf]
    %v88 = vld [vmem:[#allocation2 + $0x10] sm:$0xf]
    %v89 = vld [vmem:[#allocation2 + $0x14] sm:$0xf]
    %v90 = vld [vmem:[#allocation2 + $0x18] sm:$0xf]
    %v91 = vld [vmem:[#allocation2 + $0x1c] sm:$0xf]
    %v92 = vld [vmem:[#allocation2 + $0x20] sm:$0xf]
    %v93 = vld [vmem:[#allocation2 + $0x24] sm:$0xf]
    %v94 = vld [vmem:[#allocation2 + $0x28] sm:$0xf]
    %v95 = vld [vmem:[#allocation2 + $0x2c] sm:$0xf]
    %v96 = vld [vmem:[#allocation2 + $0x30] sm:$0xf]
    %v97 = vld [vmem:[#allocation2 + $0x34] sm:$0xf]
    %v98 = vld [vmem:[#allocation2 + $0x38] sm:$0xf]
    %v99 = vld [vmem:[#allocation2 + $0x3c] sm:$0xf]
    %v102 = vunpack.c.l.b16 %v77
    %v103 = vunpack.c.l.b16 %v78
    %v104 = vpack.c.b16 %v103, %v102
    %v122 = vunpack.c.l.b16 %v84
    %v123 = vunpack.c.l.b16 %v85
    %v124 = vunpack.c.l.b16 %v86
    %v125 = vunpack.c.l.b16 %v87
    %v126 = vunpack.c.l.b16 %v88
    %v127 = vunpack.c.l.b16 %v89
    %v128 = vunpack.c.l.b16 %v90
    %v129 = vunpack.c.l.b16 %v91
    %v130 = vunpack.c.l.b16 %v92
    %v131 = vunpack.c.l.b16 %v93
    %v132 = vunpack.c.l.b16 %v94
    %v133 = vunpack.c.l.b16 %v95
    %v134 = vunpack.c.l.b16 %v96
    %v135 = vunpack.c.l.b16 %v97
    %v136 = vunpack.c.l.b16 %v98
    %v137 = vunpack.c.l.b16 %v99
    %v138 = vpack.c.b16 %v123, %v122
    %v139 = vpack.c.b16 %v125, %v124
    %v140 = vpack.c.b16 %v127, %v126
    %v141 = vpack.c.b16 %v129, %v128
    %v142 = vpack.c.b16 %v131, %v130
    %v143 = vpack.c.b16 %v133, %v132
    %v144 = vpack.c.b16 %v135, %v134
    %v145 = vpack.c.b16 %v137, %v136
    %154 = vmatprep.subr.bf16.mxu0 0
    %155 = vmatpush1.bf16.msra.mxu0 %v145
    %156 = vmatprep.subr.bf16.mxu0 0
    %157 = vmatpush1.bf16.msra.mxu0 %v144
    %158 = vmatprep.subr.bf16.mxu0 0
    %159 = vmatpush1.bf16.msra.mxu0 %v143
    %160 = vmatprep.subr.bf16.mxu0 0
    %161 = vmatpush1.bf16.msra.mxu0 %v142
    %162 = vmatprep.subr.bf16.mxu0 0
    %163 = vmatpush1.bf16.msra.mxu0 %v141
    %164 = vmatprep.subr.bf16.mxu0 0
    %165 = vmatpush1.bf16.msra.mxu0 %v140
    %166 = vmatprep.subr.bf16.mxu0 0
    %167 = vmatpush1.bf16.msra.mxu0 %v139
    %168 = vmatprep.subr.bf16.mxu0 0
    %169 = vmatpush1.bf16.msra.mxu0 %v138
    %170 = vmatprep.subr.bf16.mxu0 0
    %171 = vmatpush2.bf16.msra.mxu0 0
    %172 = vmatprep.subr.bf16.mxu0 0
    %173 = vmatpush2.bf16.msra.mxu0 0
    %174 = vmatprep.subr.bf16.mxu0 0
    %175 = vmatpush2.bf16.msra.mxu0 0
    %176 = vmatprep.subr.bf16.mxu0 0
    %177 = vmatpush2.bf16.msra.mxu0 0
    %178 = vmatprep.subr.bf16.mxu0 0
    %179 = vmatpush2.bf16.msra.mxu0 0
    %180 = vmatprep.subr.bf16.mxu0 0
    %181 = vmatpush2.bf16.msra.mxu0 0
    %182 = vmatprep.subr.bf16.mxu0 0
    %183 = vmatpush2.bf16.msra.mxu0 0
    %184 = vmatprep.subr.bf16.mxu0 0
    %185 = vmatpush2.bf16.msra.mxu0 0
    %186 = vmatprep.mubr.bf16.mxu0 0
    %187 = vmatmul.mubr.bf16.gmra.mxu0 %v104
    %v188 = vpop.f32.mrf.mxu0
    %v189 = vadd.f32 0.0, %v188
    %v190 = vpop.f32.mrf.mxu0
    %v191 = vpop.f32.mrf.mxu0
    %v192 = vadd.f32 0.0, %v191
    %v193 = vpop.f32.mrf.mxu0
    %194 = vdwg.mxu0
    %v195 = vadd.f32 %v189, %v192
    %v196 = vrot.slane %v195, 4
    %v197 = vadd.f32 %v195, %v196
    %v198 = vrot.slane %v197, 2
    %v199 = vadd.f32 %v197, %v198
    %v200 = vrot.slane %v199, 1
    %v201 = vadd.f32 %v199, %v200
    %v202 = vmul.f32 %v201, 0.125
    %v203 = vmul.f32 %v189, %v189
    %v204 = vmul.f32 %v192, %v192
    %v205 = vadd.f32 %v203, %v204
    %v206 = vrot.slane %v205, 4
    %v207 = vadd.f32 %v205, %v206
    %v208 = vrot.slane %v207, 2
    %v209 = vadd.f32 %v207, %v208
    %v210 = vrot.slane %v209, 1
    %v211 = vadd.f32 %v209, %v210
    %v212 = vmul.f32 %v211, 0.125
    %v213 = vmul.f32 %v202, %v202
    %v214 = vsub.f32 %v212, %v213
    %v215 = vmax.f32 %v214, 0.0
    %v216 = vld [vmem:[%s2] sm:$0x1]
    %v217 = vadd.f32 %v215, 1e-05
    %v218 = vrsqrt.pop %v217
    %v219 = vmul.f32 %v216, %v218
    %v220 = vld [vmem:[%s3] sm:$0x1]
    %v221 = vmul.f32 %v202, %v219
    %v222 = vsub.f32 %v220, %v221
    %v224 = vlaneseq
    %v225 = vshrl.u32 %v224, 7
    %v226 = vsub.s32 0, %v225
    %v227 = vrot.slane %v219, %v226
    %v229 = vmul.f32 %v189, %v227
    %v230 = vmul.f32 %v192, %v227
    %v232 = vlaneseq
    %v233 = vshrl.u32 %v232, 7
    %v234 = vsub.s32 0, %v233
    %v235 = vrot.slane %v222, %v234
    %v237 = vadd.f32 %v229, %v235
    %v238 = vadd.f32 %v230, %v235
    %v239 = vmax.f32 %v237, 0.0
    %v240 = vmax.f32 %v238, 0.0
    %v241 = vsel %vm82, 1, 0
    %v242 = vsel %vm83, 1, 0
    %vm243 = vcmp.eq.s32.totalorder %v241, 1
    %vm244 = vcmp.eq.s32.totalorder %v242, 1
    %v245 = vsel %vm243, %v239, 0.0
    %v246 = vsel %vm244, %v240, 0.0
    %v247 = vpack.c.bf16 %v246, %v245
    %v248 = vld [vmem:[#allocation4] sm:$0xf]
    %v249 = vld [vmem:[#allocation4 + $0x4] sm:$0xf]
    %v250 = vld [vmem:[#allocation4 + $0x8] sm:$0xf]
    %v251 = vld [vmem:[#allocation4 + $0xc] sm:$0xf]
    %v252 = vld [vmem:[#allocation4 + $0x10] sm:$0xf]
    %v253 = vld [vmem:[#allocation4 + $0x14] sm:$0xf]
    %v254 = vld [vmem:[#allocation4 + $0x18] sm:$0xf]
    %v255 = vld [vmem:[#allocation4 + $0x1c] sm:$0xf]
    %v256 = vld [vmem:[#allocation4 + $0x20] sm:$0xf]
    %v257 = vld [vmem:[#allocation4 + $0x24] sm:$0xf]
    %v258 = vld [vmem:[#allocation4 + $0x28] sm:$0xf]
    %v259 = vld [vmem:[#allocation4 + $0x2c] sm:$0xf]
    %v260 = vld [vmem:[#allocation4 + $0x30] sm:$0xf]
    %v261 = vld [vmem:[#allocation4 + $0x34] sm:$0xf]
    %v262 = vld [vmem:[#allocation4 + $0x38] sm:$0xf]
    %v263 = vld [vmem:[#allocation4 + $0x3c] sm:$0xf]
    %v280 = vunpack.c.l.b16 %v248
    %v281 = vunpack.c.l.b16 %v249
    %v282 = vunpack.c.l.b16 %v250
    %v283 = vunpack.c.l.b16 %v251
    %v284 = vunpack.c.l.b16 %v252
    %v285 = vunpack.c.l.b16 %v253
    %v286 = vunpack.c.l.b16 %v254
    %v287 = vunpack.c.l.b16 %v255
    %v288 = vunpack.c.l.b16 %v256
    %v289 = vunpack.c.l.b16 %v257
    %v290 = vunpack.c.l.b16 %v258
    %v291 = vunpack.c.l.b16 %v259
    %v292 = vunpack.c.l.b16 %v260
    %v293 = vunpack.c.l.b16 %v261
    %v294 = vunpack.c.l.b16 %v262
    %v295 = vunpack.c.l.b16 %v263
    %v296 = vpack.c.b16 %v281, %v280
    %v297 = vpack.c.b16 %v283, %v282
    %v298 = vpack.c.b16 %v285, %v284
    %v299 = vpack.c.b16 %v287, %v286
    %v300 = vpack.c.b16 %v289, %v288
    %v301 = vpack.c.b16 %v291, %v290
    %v302 = vpack.c.b16 %v293, %v292
    %v303 = vpack.c.b16 %v295, %v294
    %312 = vmatprep.subr.bf16.mxu0 0
    %313 = vmatpush1.bf16.msra.mxu0 %v303
    %314 = vmatprep.subr.bf16.mxu0 0
    %315 = vmatpush1.bf16.msra.mxu0 %v302
    %316 = vmatprep.subr.bf16.mxu0 0
    %317 = vmatpush1.bf16.msra.mxu0 %v301
    %318 = vmatprep.subr.bf16.mxu0 0
    %319 = vmatpush1.bf16.msra.mxu0 %v300
    %320 = vmatprep.subr.bf16.mxu0 0
    %321 = vmatpush1.bf16.msra.mxu0 %v299
    %322 = vmatprep.subr.bf16.mxu0 0
    %323 = vmatpush1.bf16.msra.mxu0 %v298
    %324 = vmatprep.subr.bf16.mxu0 0
    %325 = vmatpush1.bf16.msra.mxu0 %v297
    %326 = vmatprep.subr.bf16.mxu0 0
    %327 = vmatpush1.bf16.msra.mxu0 %v296
    %328 = vmatprep.subr.bf16.mxu0 0
    %329 = vmatpush2.bf16.msra.mxu0 0
    %330 = vmatprep.subr.bf16.mxu0 0
    %331 = vmatpush2.bf16.msra.mxu0 0
    %332 = vmatprep.subr.bf16.mxu0 0
    %333 = vmatpush2.bf16.msra.mxu0 0
    %334 = vmatprep.subr.bf16.mxu0 0
    %335 = vmatpush2.bf16.msra.mxu0 0
    %336 = vmatprep.subr.bf16.mxu0 0
    %337 = vmatpush2.bf16.msra.mxu0 0
    %338 = vmatprep.subr.bf16.mxu0 0
    %339 = vmatpush2.bf16.msra.mxu0 0
    %340 = vmatprep.subr.bf16.mxu0 0
    %341 = vmatpush2.bf16.msra.mxu0 0
    %342 = vmatprep.subr.bf16.mxu0 0
    %343 = vmatpush2.bf16.msra.mxu0 0
    %344 = vmatprep.mubr.bf16.mxu0 0
    %345 = vmatmul.mubr.bf16.gmra.mxu0 %v247
    %v346 = vpop.f32.mrf.mxu0
    %v347 = vadd.f32 0.0, %v346
    %v348 = vpop.f32.mrf.mxu0
    %v349 = vpop.f32.mrf.mxu0
    %v350 = vadd.f32 0.0, %v349
    %v351 = vpop.f32.mrf.mxu0
    %352 = vdwg.mxu0
    %v353 = vadd.f32 %v347, %v350
    %v354 = vrot.slane %v353, 4
    %v355 = vadd.f32 %v353, %v354
    %v356 = vrot.slane %v355, 2
    %v357 = vadd.f32 %v355, %v356
    %v358 = vrot.slane %v357, 1
    %v359 = vadd.f32 %v357, %v358
    %v360 = vmul.f32 %v359, 0.125
    %v361 = vmul.f32 %v347, %v347
    %v362 = vmul.f32 %v350, %v350
    %v363 = vadd.f32 %v361, %v362
    %v364 = vrot.slane %v363, 4
    %v365 = vadd.f32 %v363, %v364
    %v366 = vrot.slane %v365, 2
    %v367 = vadd.f32 %v365, %v366
    %v368 = vrot.slane %v367, 1
    %v369 = vadd.f32 %v367, %v368
    %v370 = vmul.f32 %v369, 0.125
    %v371 = vmul.f32 %v360, %v360
    %v372 = vsub.f32 %v370, %v371
    %v373 = vmax.f32 %v372, 0.0
    %v374 = vld [vmem:[%s5] sm:$0x1]
    %v375 = vadd.f32 %v373, 1e-05
    %v376 = vrsqrt.pop %v375
    %v377 = vmul.f32 %v374, %v376
    %v378 = vld [vmem:[%s6] sm:$0x1]
    %v379 = vmul.f32 %v360, %v377
    %v380 = vsub.f32 %v378, %v379
    %v382 = vlaneseq
    %v383 = vshrl.u32 %v382, 7
    %v384 = vsub.s32 0, %v383
    %v385 = vrot.slane %v377, %v384
    %v387 = vmul.f32 %v347, %v385
    %v388 = vmul.f32 %v350, %v385
    %v390 = vlaneseq
    %v391 = vshrl.u32 %v390, 7
    %v392 = vsub.s32 0, %v391
    %v393 = vrot.slane %v380, %v392
    %v395 = vadd.f32 %v387, %v393
    %v396 = vadd.f32 %v388, %v393
    %v397 = vmax.f32 %v395, 0.0
    %v398 = vmax.f32 %v396, 0.0
    %v399 = vsel %vm243, %v397, 0.0
    %v400 = vsel %vm244, %v398, 0.0
    %v401 = vpack.c.bf16 %v400, %v399
    %v402 = vld [vmem:[#allocation6] sm:$0xf]
    %v403 = vld [vmem:[#allocation6 + $0x4] sm:$0xf]
    %v404 = vld [vmem:[#allocation6 + $0x8] sm:$0xf]
    %v405 = vld [vmem:[#allocation6 + $0xc] sm:$0xf]
    %v406 = vld [vmem:[#allocation6 + $0x10] sm:$0xf]
    %v407 = vld [vmem:[#allocation6 + $0x14] sm:$0xf]
    %v408 = vld [vmem:[#allocation6 + $0x18] sm:$0xf]
    %v409 = vld [vmem:[#allocation6 + $0x1c] sm:$0xf]
    %v410 = vld [vmem:[#allocation6 + $0x20] sm:$0xf]
    %v411 = vld [vmem:[#allocation6 + $0x24] sm:$0xf]
    %v412 = vld [vmem:[#allocation6 + $0x28] sm:$0xf]
    %v413 = vld [vmem:[#allocation6 + $0x2c] sm:$0xf]
    %v414 = vld [vmem:[#allocation6 + $0x30] sm:$0xf]
    %v415 = vld [vmem:[#allocation6 + $0x34] sm:$0xf]
    %v416 = vld [vmem:[#allocation6 + $0x38] sm:$0xf]
    %v417 = vld [vmem:[#allocation6 + $0x3c] sm:$0xf]
    %v434 = vunpack.c.l.b16 %v402
    %v435 = vunpack.c.l.b16 %v403
    %v436 = vunpack.c.l.b16 %v404
    %v437 = vunpack.c.l.b16 %v405
    %v438 = vunpack.c.l.b16 %v406
    %v439 = vunpack.c.l.b16 %v407
    %v440 = vunpack.c.l.b16 %v408
    %v441 = vunpack.c.l.b16 %v409
    %v442 = vunpack.c.l.b16 %v410
    %v443 = vunpack.c.l.b16 %v411
    %v444 = vunpack.c.l.b16 %v412
    %v445 = vunpack.c.l.b16 %v413
    %v446 = vunpack.c.l.b16 %v414
    %v447 = vunpack.c.l.b16 %v415
    %v448 = vunpack.c.l.b16 %v416
    %v449 = vunpack.c.l.b16 %v417
    %v450 = vpack.c.b16 %v435, %v434
    %v451 = vpack.c.b16 %v437, %v436
    %v452 = vpack.c.b16 %v439, %v438
    %v453 = vpack.c.b16 %v441, %v440
    %v454 = vpack.c.b16 %v443, %v442
    %v455 = vpack.c.b16 %v445, %v444
    %v456 = vpack.c.b16 %v447, %v446
    %v457 = vpack.c.b16 %v449, %v448
    %466 = vmatprep.subr.bf16.mxu0 0
    %467 = vmatpush1.bf16.msra.mxu0 %v457
    %468 = vmatprep.subr.bf16.mxu0 0
    %469 = vmatpush1.bf16.msra.mxu0 %v456
    %470 = vmatprep.subr.bf16.mxu0 0
    %471 = vmatpush1.bf16.msra.mxu0 %v455
    %472 = vmatprep.subr.bf16.mxu0 0
    %473 = vmatpush1.bf16.msra.mxu0 %v454
    %474 = vmatprep.subr.bf16.mxu0 0
    %475 = vmatpush1.bf16.msra.mxu0 %v453
    %476 = vmatprep.subr.bf16.mxu0 0
    %477 = vmatpush1.bf16.msra.mxu0 %v452
    %478 = vmatprep.subr.bf16.mxu0 0
    %479 = vmatpush1.bf16.msra.mxu0 %v451
    %480 = vmatprep.subr.bf16.mxu0 0
    %481 = vmatpush1.bf16.msra.mxu0 %v450
    %482 = vmatprep.subr.bf16.mxu0 0
    %483 = vmatpush2.bf16.msra.mxu0 0
    %484 = vmatprep.subr.bf16.mxu0 0
    %485 = vmatpush2.bf16.msra.mxu0 0
    %486 = vmatprep.subr.bf16.mxu0 0
    %487 = vmatpush2.bf16.msra.mxu0 0
    %488 = vmatprep.subr.bf16.mxu0 0
    %489 = vmatpush2.bf16.msra.mxu0 0
    %490 = vmatprep.subr.bf16.mxu0 0
    %491 = vmatpush2.bf16.msra.mxu0 0
    %492 = vmatprep.subr.bf16.mxu0 0
    %493 = vmatpush2.bf16.msra.mxu0 0
    %494 = vmatprep.subr.bf16.mxu0 0
    %495 = vmatpush2.bf16.msra.mxu0 0
    %496 = vmatprep.subr.bf16.mxu0 0
    %497 = vmatpush2.bf16.msra.mxu0 0
    %498 = vmatprep.mubr.bf16.mxu0 0
    %499 = vmatmul.mubr.bf16.gmra.mxu0 %v401
    %v500 = vpop.f32.mrf.mxu0
    %v501 = vadd.f32 0.0, %v500
    %v502 = vpop.f32.mrf.mxu0
    %v503 = vpop.f32.mrf.mxu0
    %v504 = vadd.f32 0.0, %v503
    %v505 = vpop.f32.mrf.mxu0
    %506 = vdwg.mxu0
    %v507 = vadd.f32 %v501, %v504
    %v508 = vrot.slane %v507, 4
    %v509 = vadd.f32 %v507, %v508
    %v510 = vrot.slane %v509, 2
    %v511 = vadd.f32 %v509, %v510
    %v512 = vrot.slane %v511, 1
    %v513 = vadd.f32 %v511, %v512
    %v514 = vmul.f32 %v513, 0.125
    %v515 = vmul.f32 %v501, %v501
    %v516 = vmul.f32 %v504, %v504
    %v517 = vadd.f32 %v515, %v516
    %v518 = vrot.slane %v517, 4
    %v519 = vadd.f32 %v517, %v518
    %v520 = vrot.slane %v519, 2
    %v521 = vadd.f32 %v519, %v520
    %v522 = vrot.slane %v521, 1
    %v523 = vadd.f32 %v521, %v522
    %v524 = vmul.f32 %v523, 0.125
    %v525 = vmul.f32 %v514, %v514
    %v526 = vsub.f32 %v524, %v525
    %v527 = vmax.f32 %v526, 0.0
    %v528 = vld [vmem:[%s8] sm:$0x1]
    %v529 = vadd.f32 %v527, 1e-05
    %v530 = vrsqrt.pop %v529
    %v531 = vmul.f32 %v528, %v530
    %v532 = vld [vmem:[%s9] sm:$0x1]
    %v533 = vmul.f32 %v514, %v531
    %v534 = vsub.f32 %v532, %v533
    %v536 = vlaneseq
    %v537 = vshrl.u32 %v536, 7
    %v538 = vsub.s32 0, %v537
    %v539 = vrot.slane %v531, %v538
    %v541 = vmul.f32 %v501, %v539
    %v542 = vmul.f32 %v504, %v539
    %v544 = vlaneseq
    %v545 = vshrl.u32 %v544, 7
    %v546 = vsub.s32 0, %v545
    %v547 = vrot.slane %v534, %v546
    %v549 = vadd.f32 %v541, %v547
    %v550 = vadd.f32 %v542, %v547
    %v551 = vmax.f32 %v549, 0.0
    %v552 = vmax.f32 %v550, 0.0
    %553 = vst [vmem:[%s10] sm:$0xff] %v551
    %554 = vst [vmem:[%s10 + $0x8] sm:$0xff] %v552
    // Predicated region
    $region54: #{mlp_forward.1} parent=1 // pred_check
      _
    $region55: #{mlp_forward.1} parent=1 // pred_check_branch
      %556 = sbr.rel (0) target = $region57
    $region56: #{mlp_forward.1} parent=1 // pred_region
      _
    $region57: #{mlp_forward.1} parent=1 // pred_fallthru
      _
    // Predicated region
    $region58: #{mlp_forward.1} parent=1 // pred_check
      _
    $region59: #{mlp_forward.1} parent=1 // pred_check_branch
      %558 = sbr.rel (0) target = $region61
    $region60: #{mlp_forward.1} parent=1 // pred_region
      _
    $region61: #{mlp_forward.1} parent=1 // pred_fallthru
      _
    %559 = vsyncpa [#allocation3], 1
    %560 = vsyncpa [#allocation5], 1

</llo_original>
